<compile_context>
chip_gen: v6e
topology: v6e:2x2x1
jax: 0.10.0
libtpu: 0.0.40
codegen_flags: <defaults>
</compile_context>

<pallas_src>
import math

import jax
import jax.numpy as jnp
import numpy as np
from jax.experimental import pallas as pl
from jax.experimental.pallas import tpu as pltpu

# Module hyper-parameters (GraphConvTagger(num_layers=2, hidden_units=32, ...)).
B = 2                 # batch
N = 16                # number of graph nodes
HIDDEN = 32           # hidden_units == GraphConvolution feature_size
NUM_CLASSES = 4
VOCAB_SIZE = 50
NUM_LAYERS = 2
ATN_SIZE = 64         # GraphConvolution.atn_feature_size
EMB_SIZE = HIDDEN - NUM_CLASSES   # 28

# Lane-aligned padded sizes used inside the kernel.
BN = B * N            # 32  -- flattened batch*node slab
HP = 128              # hidden padded to one full lane tile
AP = 128              # attention feature dim padded to one full lane tile
CP = 128              # classifier output padded to one full lane tile
NEG = jnp.float32(-1e30)


def gct_kernel(feats_ref, maskb_ref, hasnb_ref, wqkv_ref, bg_ref, wc_ref,
               bc_ref, out_ref):
    feats = feats_ref[...]                        # (BN, HP) f32, real cols [:HIDDEN]
    mask_bias = maskb_ref[...]                    # (BN, BN) f32, 0 / -1e30 block-diag
    has_nb = hasnb_ref[...]                       # (BN, 1)  f32 {0., 1.}
    wqkv = wqkv_ref[...]                          # (HP, 3*AP) bf16 packed [Wq|Wk|Wv]
    inv_scale = jnp.float32(1.0 / math.sqrt(ATN_SIZE))
    # Hoist the bias broadcast out of the unrolled layer loop (no CSE in JAX).
    bgb = jnp.broadcast_to(bg_ref[...], (BN, HP))

    # Static (fully unrolled) layer loop -- weights shared across layers.
    for _ in range(NUM_LAYERS):
        # One packed QKV projection per layer (single MXU dot, bf16 operands).
        qkv = jnp.dot(feats.astype(jnp.bfloat16), wqkv,
                      preferred_element_type=jnp.float32)        # (BN, 3*AP) f32
        q = qkv[:, 0:AP]                     # lane-aligned vreg slice (pad cols = 0)
        k = qkv[:, AP:2 * AP]
        v = jnp.tanh(qkv[:, 2 * AP:3 * AP])  # tanh(0)=0 -> padded cols stay 0

        # Block-diagonal attention over the whole slab: one score dot, one PV dot.
        s = jax.lax.dot_general(
            q.astype(jnp.bfloat16), k.astype(jnp.bfloat16),
            (((1,), (1,)), ((), ())),
            preferred_element_type=jnp.float32) * inv_scale + mask_bias   # (BN, BN)

        m = jnp.max(s, axis=-1, keepdims=True)
        p = jnp.exp(s - m)                           # masked entries underflow to 0
        denom = jnp.sum(p, axis=-1, keepdims=True)   # always > 0
        attn = jnp.dot(p.astype(jnp.bfloat16), v.astype(jnp.bfloat16),
                       preferred_element_type=jnp.float32)        # (BN, HP)
        # Normalize; rows with no neighbors are forced to 0 (PyTorch 'continue').
        attn = attn * (has_nb * pl.reciprocal(denom, approx=True))
        feats = attn + bgb                           # padded cols remain exactly 0

    # Classifier + final softmax on a full 128-lane block (padded logits = -1e30).
    logits = jnp.dot(feats.astype(jnp.bfloat16), wc_ref[...],
                     preferred_element_type=jnp.float32) + bc_ref[...]    # (BN, CP)
    lm = jnp.max(logits, axis=-1, keepdims=True)
    e = jnp.exp(logits - lm)                         # padded lanes -> 0
    out_ref[...] = e / jnp.sum(e, axis=-1, keepdims=True)


def pack_params(params):
    """Pre-pack / pad weights into the lane-aligned layouts the kernel expects."""
    wqkv = jnp.zeros((HP, 3 * AP), jnp.float32)
    wqkv = wqkv.at[:HIDDEN, 0:ATN_SIZE].set(params["wq"])
    wqkv = wqkv.at[:HIDDEN, AP:AP + ATN_SIZE].set(params["wk"])
    wqkv = wqkv.at[:HIDDEN, 2 * AP:2 * AP + HIDDEN].set(params["wv"])
    bg = jnp.zeros((1, HP), jnp.float32).at[:, :HIDDEN].set(params["bg"])
    wc = jnp.zeros((HP, CP), jnp.float32).at[:HIDDEN, :NUM_CLASSES].set(params["wc"])
    bc = jnp.full((1, CP), NEG, jnp.float32).at[:, :NUM_CLASSES].set(params["bc"])
    return {
        "wqkv": wqkv.astype(jnp.bfloat16),
        "bg": bg,
        "wc": wc.astype(jnp.bfloat16),
        "bc": bc,
    }


def graph_conv_tagger_forward(x_ids, cue, adj, params, packed):
    # Embedding gather + one-hot cue are pure gather glue; stay in the wrapper.
    x_emb = jnp.take(params["embedding"], x_ids, axis=0)             # (B, N, EMB)
    cue_oh = jax.nn.one_hot(cue, NUM_CLASSES, dtype=jnp.float32)     # (B, N, C)
    feats = jnp.concatenate([x_emb, cue_oh], axis=-1)                # (B, N, HIDDEN)
    feats_pad = jnp.pad(feats.reshape(BN, HIDDEN), ((0, 0), (0, HP - HIDDEN)))

    # Block-diagonal additive mask + per-row has-neighbor flag (built outside).
    adj_f = adj.astype(jnp.float32)
    adj_bd = jnp.zeros((BN, BN), jnp.float32)
    for b in range(B):                                               # static, B=2
        adj_bd = adj_bd.at[b * N:(b + 1) * N, b * N:(b + 1) * N].set(adj_f[b])
    mask_bias = jnp.where(adj_bd != 0.0, 0.0, NEG).astype(jnp.float32)
    has_nb = (jnp.sum(adj_f, axis=-1) > 0.0).astype(jnp.float32).reshape(BN, 1)

    vmem = lambda: pl.BlockSpec(memory_space=pltpu.MemorySpace.VMEM)
    out2d = pl.pallas_call(
        gct_kernel,
        out_shape=jax.ShapeDtypeStruct((BN, CP), jnp.float32),
        in_specs=[vmem() for _ in range(7)],
        out_specs=vmem(),
        cost_estimate=pl.CostEstimate(flops=9_000_000, transcendentals=12_000,
                                      bytes_accessed=200_000),
    )(feats_pad, mask_bias, has_nb,
      packed["wqkv"], packed["bg"], packed["wc"], packed["bc"])

    return out2d[:, :NUM_CLASSES].reshape(B, N, NUM_CLASSES)


def init_params(key):
    ks = jax.random.split(key, 7)
    kq = 1.0 / math.sqrt(HIDDEN)

    def u(kk, shape, bound):
        return jax.random.uniform(kk, shape, jnp.float32, -bound, bound)

    return {
        "embedding": jax.random.normal(ks[0], (VOCAB_SIZE, EMB_SIZE), jnp.float32),
        "wq": u(ks[1], (HIDDEN, ATN_SIZE), kq),      # atn_q.weight.T
        "wk": u(ks[2], (HIDDEN, ATN_SIZE), kq),      # atn_k.weight.T
        "wv": u(ks[3], (HIDDEN, HIDDEN), kq),        # atn_v.weight.T
        "bg": u(ks[4], (1, HIDDEN), kq),             # GraphConvolution.bias
        "wc": u(ks[5], (HIDDEN, NUM_CLASSES), kq),   # classifier.weight.T
        "bc": u(ks[6], (1, NUM_CLASSES), kq),        # classifier.bias
    }


def _softmax_np(v):
    v = v - v.max(axis=-1, keepdims=True)
    e = np.exp(v)
    return e / e.sum(axis=-1, keepdims=True)


def reference_forward(x_ids, cue, adj, params):
    """Pure-numpy f32 reference mirroring the PyTorch forward loops exactly."""
    emb = np.asarray(params["embedding"])
    wq = np.asarray(params["wq"])
    wk = np.asarray(params["wk"])
    wv = np.asarray(params["wv"])
    bg = np.asarray(params["bg"])[0]
    wc = np.asarray(params["wc"])
    bc = np.asarray(params["bc"])[0]
    x_ids = np.asarray(x_ids)
    cue = np.asarray(cue)
    A = np.asarray(adj, np.float32)

    x_emb = emb[x_ids]                                            # (B, N, EMB)
    cue_oh = np.eye(NUM_CLASSES, dtype=np.float32)[cue]           # (B, N, C)
    feats = np.concatenate([x_emb, cue_oh], axis=-1).astype(np.float32)

    for _ in range(NUM_LAYERS):
        out = np.zeros((B, N, HIDDEN), np.float32)
        for b in range(B):
            for i in range(N):
                cx = A[b, i]
                if cx.sum() == 0:
                    continue                                      # row stays zero
                nb = feats[b, cx != 0, :]                         # (k, H)
                query = feats[b, i] @ wq                          # (ATN,)
                keys = nb @ wk                                    # (k, ATN)
                values = np.tanh(nb @ wv)                         # (k, H)
                scores = keys @ query / math.sqrt(ATN_SIZE)
                w = _softmax_np(scores)
                out[b, i] = w @ values
        feats = out + bg                                          # bias on every row
    logits = feats @ wc + bc
    return _softmax_np(logits)


if __name__ == "__main__":
    key = jax.random.PRNGKey(0)
    pkey, xkey, ckey, akey = jax.random.split(key, 4)
    params = init_params(pkey)
    packed = pack_params(params)

    x_ids = jax.random.randint(xkey, (B, N), 0, VOCAB_SIZE)       # word ids
    cue = jax.random.randint(ckey, (B, N), 0, NUM_CLASSES)        # cue labels
    adj = (jax.random.uniform(akey, (B, N, N)) < 0.35).astype(jnp.float32)
    adj = adj.at[1, 3, :].set(0.0)   # exercise the "node with no neighbors" path

    yhat = graph_conv_tagger_forward(x_ids, cue, adj, params, packed)
    yhat = jax.block_until_ready(yhat)
    assert yhat.shape == (B, N, NUM_CLASSES), yhat.shape

    ref = reference_forward(x_ids, cue, adj, params)
    max_err = float(jnp.max(jnp.abs(yhat - jnp.asarray(ref))))
    # Tolerance widened vs the pure-f32 version because the matmuls now run with
    # bf16 operands (f32 accumulation); a genuine logic bug shows errors >> 0.1.
    assert max_err < 2.5e-2, f"mismatch vs reference, max abs err = {max_err}"

    # Rows of a probability distribution must sum to 1 (final softmax is f32/exact).
    row_sums = float(jnp.max(jnp.abs(jnp.sum(yhat, axis=-1) - 1.0)))
    assert row_sums < 1e-4, row_sums

    print("KERNEL_OK")
</pallas_src>

<mosaic_0001>
module attributes {stable_mosaic.version = 11 : i64} {
  func.func @gct_kernel(%arg0: memref<32x128xf32, #tpu.memory_space<vmem>>, %arg1: memref<32x32xf32, #tpu.memory_space<vmem>>, %arg2: memref<32x1xf32, #tpu.memory_space<vmem>>, %arg3: memref<128x384xbf16, #tpu.memory_space<vmem>>, %arg4: memref<1x128xf32, #tpu.memory_space<vmem>>, %arg5: memref<128x128xbf16, #tpu.memory_space<vmem>>, %arg6: memref<1x128xf32, #tpu.memory_space<vmem>>, %arg7: memref<32x128xf32, #tpu.memory_space<vmem>>) attributes {dimension_semantics = [], scalar_prefetch = 0 : i64, scratch_operands = 0 : i64, tpu.core_type = #tpu.core_type<tc>} {
    %c0 = arith.constant 0 : index
    %c0_0 = arith.constant 0 : index
    %0 = vector.load %arg0[%c0, %c0_0] : memref<32x128xf32, #tpu.memory_space<vmem>>, vector<32x128xf32>
    %c0_1 = arith.constant 0 : index
    %c0_2 = arith.constant 0 : index
    %1 = vector.load %arg1[%c0_1, %c0_2] : memref<32x32xf32, #tpu.memory_space<vmem>>, vector<32x32xf32>
    %c0_3 = arith.constant 0 : index
    %c0_4 = arith.constant 0 : index
    %2 = vector.load %arg2[%c0_3, %c0_4] : memref<32x1xf32, #tpu.memory_space<vmem>>, vector<32x1xf32>
    %c0_5 = arith.constant 0 : index
    %c0_6 = arith.constant 0 : index
    %3 = vector.load %arg3[%c0_5, %c0_6] : memref<128x384xbf16, #tpu.memory_space<vmem>>, vector<128x384xbf16>
    %c0_7 = arith.constant 0 : index
    %c0_8 = arith.constant 0 : index
    %4 = vector.load %arg4[%c0_7, %c0_8] : memref<1x128xf32, #tpu.memory_space<vmem>>, vector<1x128xf32>
    %5 = vector.shape_cast %4 : vector<1x128xf32> to vector<1x128xf32>
    %6 = vector.broadcast %5 : vector<1x128xf32> to vector<32x128xf32>
    %7 = arith.truncf %0 : vector<32x128xf32> to vector<32x128xbf16>
    %cst = arith.constant dense<0.000000e+00> : vector<32x384xf32>
    %8 = tpu.matmul %7, %3, %cst {dimension_numbers = #tpu.dot_dimension_numbers<[1], [0], [0], [1], [0, 0, 1, 1], [], []>} : vector<32x128xbf16>, vector<128x384xbf16>, vector<32x384xf32> -> vector<32x384xf32>
    %9 = vector.extract_strided_slice %8 {offsets = [0, 0], sizes = [32, 128], strides = [1, 1]} : vector<32x384xf32> to vector<32x128xf32>
    %10 = vector.extract_strided_slice %8 {offsets = [0, 128], sizes = [32, 128], strides = [1, 1]} : vector<32x384xf32> to vector<32x128xf32>
    %11 = vector.extract_strided_slice %8 {offsets = [0, 256], sizes = [32, 128], strides = [1, 1]} : vector<32x384xf32> to vector<32x128xf32>
    %12 = math.tanh %11 : vector<32x128xf32>
    %13 = arith.truncf %9 : vector<32x128xf32> to vector<32x128xbf16>
    %14 = arith.truncf %10 : vector<32x128xf32> to vector<32x128xbf16>
    %cst_9 = arith.constant dense<0.000000e+00> : vector<32x32xf32>
    %15 = tpu.matmul %13, %14, %cst_9 {dimension_numbers = #tpu.dot_dimension_numbers<[1], [1], [0], [0], [0, 0, 1, 0], [], []>} : vector<32x128xbf16>, vector<32x128xbf16>, vector<32x32xf32> -> vector<32x32xf32>
    %cst_10 = arith.constant 1.250000e-01 : f32
    %16 = vector.broadcast %cst_10 : f32 to vector<32x32xf32>
    %17 = arith.mulf %15, %16 : vector<32x32xf32>
    %18 = arith.addf %17, %1 : vector<32x32xf32>
    %cst_11 = arith.constant dense<0xFF800000> : vector<32xf32>
    %19 = vector.multi_reduction <maximumf>, %18, %cst_11 [1] : vector<32x32xf32> to vector<32xf32>
    %20 = vector.shape_cast %19 : vector<32xf32> to vector<32x1xf32>
    %21 = vector.broadcast %20 : vector<32x1xf32> to vector<32x32xf32>
    %22 = arith.subf %18, %21 : vector<32x32xf32>
    %23 = math.exp %22 : vector<32x32xf32>
    %cst_12 = arith.constant dense<0.000000e+00> : vector<32xf32>
    %24 = vector.multi_reduction <add>, %23, %cst_12 [1] : vector<32x32xf32> to vector<32xf32>
    %25 = vector.shape_cast %24 : vector<32xf32> to vector<32x1xf32>
    %26 = arith.truncf %23 : vector<32x32xf32> to vector<32x32xbf16>
    %27 = arith.truncf %12 : vector<32x128xf32> to vector<32x128xbf16>
    %cst_13 = arith.constant dense<0.000000e+00> : vector<32x128xf32>
    %28 = tpu.matmul %26, %27, %cst_13 {dimension_numbers = #tpu.dot_dimension_numbers<[1], [0], [0], [1], [0, 0, 1, 1], [], []>} : vector<32x32xbf16>, vector<32x128xbf16>, vector<32x128xf32> -> vector<32x128xf32>
    %29 = tpu.reciprocal %25 {approx = true} : vector<32x1xf32> -> vector<32x1xf32>
    %30 = arith.mulf %2, %29 : vector<32x1xf32>
    %31 = vector.broadcast %30 : vector<32x1xf32> to vector<32x128xf32>
    %32 = arith.mulf %28, %31 : vector<32x128xf32>
    %33 = arith.addf %32, %6 : vector<32x128xf32>
    %34 = arith.truncf %33 : vector<32x128xf32> to vector<32x128xbf16>
    %cst_14 = arith.constant dense<0.000000e+00> : vector<32x384xf32>
    %35 = tpu.matmul %34, %3, %cst_14 {dimension_numbers = #tpu.dot_dimension_numbers<[1], [0], [0], [1], [0, 0, 1, 1], [], []>} : vector<32x128xbf16>, vector<128x384xbf16>, vector<32x384xf32> -> vector<32x384xf32>
    %36 = vector.extract_strided_slice %35 {offsets = [0, 0], sizes = [32, 128], strides = [1, 1]} : vector<32x384xf32> to vector<32x128xf32>
    %37 = vector.extract_strided_slice %35 {offsets = [0, 128], sizes = [32, 128], strides = [1, 1]} : vector<32x384xf32> to vector<32x128xf32>
    %38 = vector.extract_strided_slice %35 {offsets = [0, 256], sizes = [32, 128], strides = [1, 1]} : vector<32x384xf32> to vector<32x128xf32>
    %39 = math.tanh %38 : vector<32x128xf32>
    %40 = arith.truncf %36 : vector<32x128xf32> to vector<32x128xbf16>
    %41 = arith.truncf %37 : vector<32x128xf32> to vector<32x128xbf16>
    %cst_15 = arith.constant dense<0.000000e+00> : vector<32x32xf32>
    %42 = tpu.matmul %40, %41, %cst_15 {dimension_numbers = #tpu.dot_dimension_numbers<[1], [1], [0], [0], [0, 0, 1, 0], [], []>} : vector<32x128xbf16>, vector<32x128xbf16>, vector<32x32xf32> -> vector<32x32xf32>
    %cst_16 = arith.constant 1.250000e-01 : f32
    %43 = vector.broadcast %cst_16 : f32 to vector<32x32xf32>
    %44 = arith.mulf %42, %43 : vector<32x32xf32>
    %45 = arith.addf %44, %1 : vector<32x32xf32>
    %cst_17 = arith.constant dense<0xFF800000> : vector<32xf32>
    %46 = vector.multi_reduction <maximumf>, %45, %cst_17 [1] : vector<32x32xf32> to vector<32xf32>
    %47 = vector.shape_cast %46 : vector<32xf32> to vector<32x1xf32>
    %48 = vector.broadcast %47 : vector<32x1xf32> to vector<32x32xf32>
    %49 = arith.subf %45, %48 : vector<32x32xf32>
    %50 = math.exp %49 : vector<32x32xf32>
    %cst_18 = arith.constant dense<0.000000e+00> : vector<32xf32>
    %51 = vector.multi_reduction <add>, %50, %cst_18 [1] : vector<32x32xf32> to vector<32xf32>
    %52 = vector.shape_cast %51 : vector<32xf32> to vector<32x1xf32>
    %53 = arith.truncf %50 : vector<32x32xf32> to vector<32x32xbf16>
    %54 = arith.truncf %39 : vector<32x128xf32> to vector<32x128xbf16>
    %cst_19 = arith.constant dense<0.000000e+00> : vector<32x128xf32>
    %55 = tpu.matmul %53, %54, %cst_19 {dimension_numbers = #tpu.dot_dimension_numbers<[1], [0], [0], [1], [0, 0, 1, 1], [], []>} : vector<32x32xbf16>, vector<32x128xbf16>, vector<32x128xf32> -> vector<32x128xf32>
    %56 = tpu.reciprocal %52 {approx = true} : vector<32x1xf32> -> vector<32x1xf32>
    %57 = arith.mulf %2, %56 : vector<32x1xf32>
    %58 = vector.broadcast %57 : vector<32x1xf32> to vector<32x128xf32>
    %59 = arith.mulf %55, %58 : vector<32x128xf32>
    %60 = arith.addf %59, %6 : vector<32x128xf32>
    %61 = arith.truncf %60 : vector<32x128xf32> to vector<32x128xbf16>
    %c0_20 = arith.constant 0 : index
    %c0_21 = arith.constant 0 : index
    %62 = vector.load %arg5[%c0_20, %c0_21] : memref<128x128xbf16, #tpu.memory_space<vmem>>, vector<128x128xbf16>
    %cst_22 = arith.constant dense<0.000000e+00> : vector<32x128xf32>
    %63 = tpu.matmul %61, %62, %cst_22 {dimension_numbers = #tpu.dot_dimension_numbers<[1], [0], [0], [1], [0, 0, 1, 1], [], []>} : vector<32x128xbf16>, vector<128x128xbf16>, vector<32x128xf32> -> vector<32x128xf32>
    %c0_23 = arith.constant 0 : index
    %c0_24 = arith.constant 0 : index
    %64 = vector.load %arg6[%c0_23, %c0_24] : memref<1x128xf32, #tpu.memory_space<vmem>>, vector<1x128xf32>
    %65 = vector.broadcast %64 : vector<1x128xf32> to vector<32x128xf32>
    %66 = arith.addf %63, %65 : vector<32x128xf32>
    %cst_25 = arith.constant dense<0xFF800000> : vector<32xf32>
    %67 = vector.multi_reduction <maximumf>, %66, %cst_25 [1] : vector<32x128xf32> to vector<32xf32>
    %68 = vector.shape_cast %67 : vector<32xf32> to vector<32x1xf32>
    %69 = vector.broadcast %68 : vector<32x1xf32> to vector<32x128xf32>
    %70 = arith.subf %66, %69 : vector<32x128xf32>
    %71 = math.exp %70 : vector<32x128xf32>
    %cst_26 = arith.constant dense<0.000000e+00> : vector<32xf32>
    %72 = vector.multi_reduction <add>, %71, %cst_26 [1] : vector<32x128xf32> to vector<32xf32>
    %73 = vector.shape_cast %72 : vector<32xf32> to vector<32x1xf32>
    %74 = vector.broadcast %73 : vector<32x1xf32> to vector<32x128xf32>
    %75 = arith.divf %71, %74 : vector<32x128xf32>
    %c0_27 = arith.constant 0 : index
    %c0_28 = arith.constant 0 : index
    %76 = vector.load %arg7[%c0_27, %c0_28] : memref<32x128xf32, #tpu.memory_space<vmem>>, vector<32x128xf32>
    tpu.vector_store %arg7[%c0_27, %c0_28], %75 {strides = array<i32>} : memref<32x128xf32, #tpu.memory_space<vmem>>, vector<32x128xf32>,
    return
  }
}

</mosaic_0001>

<llo_original>
// kernel: tpu_custom_call.1
$region0: #{tpu_custom_call.1}
  #allocation0 [shape = 'u32[]', space=smem, size = 0x4, offset = 0x4, fixed_abs, tag = 'smem constant byte address 0x4 - core index']
  #allocation1 [shape = 'u32[144,128]{1,0:T(1,128)}', space=vmem, size = 0x12000, scoped, tag = 'internal scratch']
  %s0 = inlined_call_operand.vmem [shape: f32[32,128], index: 0, kind: input, shape index: {}]
  %s1 = inlined_call_operand.hbm [shape: f32[32,32], index: 1, kind: input, shape index: {}]
  %s2 = inlined_call_operand.vmem [shape: f32[32,1], index: 2, kind: input, shape index: {}]
  %s3 = inlined_call_operand.hbm [shape: bf16[128,384], index: 3, kind: input, shape index: {}]
  %s4 = inlined_call_operand.vmem [shape: f32[1,128], index: 4, kind: input, shape index: {}]
  %s5 = inlined_call_operand.hbm [shape: bf16[128,128], index: 5, kind: input, shape index: {}]
  %s6 = inlined_call_operand.vmem [shape: f32[1,128], index: 6, kind: input, shape index: {}]
  %s7 = inlined_call_operand.hbm [shape: f32[32,128], index: 7, kind: output, shape index: {}]
  %s8 = sld [smem:[#allocation0]]
  $region50: #{tpu_custom_call.1} parent=0
    _
  %s10 = ssub.s32 1, %s8
  %s11 = scalar_select 0, %s10, %s8
  $region1: #{tpu_custom_call.1} parent=0
    #allocation2 [shape = 'u8[16384]{0}', space=vmem, size = 0x4000, scoped, tag = 'input window, operand 1, single buffered']
    #allocation3 [shape = 's32[1]{0}', space=sflag, size = 0x4, scoped, tag = 'scoped memory for tpu_custom_call.1']
    #allocation4 [shape = 's32[1]{0}', space=sflag, size = 0x4, scoped, tag = 'scoped memory for tpu_custom_call.1']
    #allocation5 [shape = 'u8[98304]{0}', space=vmem, size = 0x18000, scoped, tag = 'input window, operand 3, single buffered']
    #allocation6 [shape = 's32[1]{0}', space=sflag, size = 0x4, scoped, tag = 'scoped memory for tpu_custom_call.1']
    #allocation7 [shape = 'u8[32768]{0}', space=vmem, size = 0x8000, scoped, tag = 'input window, operand 5, single buffered']
    #allocation8 [shape = 'u8[16384]{0}', space=vmem, size = 0x4000, scoped, tag = 'output window, operand 0, single buffered']
    %12 = vsyncpa [#allocation3], 0
    %13 = vsyncpa [#allocation6], 0
    %14 = vsyncpa [#allocation4], 0
    // Predicated region
    $region2: #{tpu_custom_call.1} parent=1 // pred_check
      _
    $region3: #{tpu_custom_call.1} parent=1 // pred_check_branch
      %16 = sbr.rel (0) target = $region5
    $region4: #{tpu_custom_call.1} parent=1 // pred_region
      _
    $region5: #{tpu_custom_call.1} parent=1 // pred_fallthru
      _
    // Predicated region
    $region6: #{tpu_custom_call.1} parent=1 // pred_check
      _
    $region7: #{tpu_custom_call.1} parent=1 // pred_check_branch
      %18 = sbr.rel (0) target = $region9
    $region8: #{tpu_custom_call.1} parent=1 // pred_region
      %s20 = ssub.s32 512, 512
      %21 = vsyncadd [#allocation3], %s20
      %s22 = sshll.u32 [#allocation2], 4
      %s23 = int_to_ptr.vmem [resolvable:$true] %s22
      %28 = dma.hbm_to_vmem [thread:$0]  %s1, 512, %s23, [#allocation3], 128, 128, 8
    $region9: #{tpu_custom_call.1} parent=1 // pred_fallthru
      _
    // Predicated region
    $region10: #{tpu_custom_call.1} parent=1 // pred_check
      _
    $region11: #{tpu_custom_call.1} parent=1 // pred_check_branch
      %30 = sbr.rel (0) target = $region13
    $region12: #{tpu_custom_call.1} parent=1 // pred_region
      _
    $region13: #{tpu_custom_call.1} parent=1 // pred_fallthru
      _
    // Predicated region
    $region14: #{tpu_custom_call.1} parent=1 // pred_check
      _
    $region15: #{tpu_custom_call.1} parent=1 // pred_check_branch
      %32 = sbr.rel (0) target = $region17
    $region16: #{tpu_custom_call.1} parent=1 // pred_region
      %s34 = ssub.s32 3072, 3072
      %35 = vsyncadd [#allocation6], %s34
      %s36 = sshll.u32 [#allocation5], 4
      %s37 = int_to_ptr.vmem [resolvable:$true] %s36
      %42 = dma.hbm_to_vmem [thread:$0]  %s3, 3072, %s37, [#allocation6], 192, 192, 12
    $region17: #{tpu_custom_call.1} parent=1 // pred_fallthru
      _
    // Predicated region
    $region18: #{tpu_custom_call.1} parent=1 // pred_check
      _
    $region19: #{tpu_custom_call.1} parent=1 // pred_check_branch
      %44 = sbr.rel (0) target = $region21
    $region20: #{tpu_custom_call.1} parent=1 // pred_region
      _
    $region21: #{tpu_custom_call.1} parent=1 // pred_fallthru
      _
    // Predicated region
    $region22: #{tpu_custom_call.1} parent=1 // pred_check
      _
    $region23: #{tpu_custom_call.1} parent=1 // pred_check_branch
      %46 = sbr.rel (0) target = $region25
    $region24: #{tpu_custom_call.1} parent=1 // pred_region
      %s48 = ssub.s32 1024, 1024
      %49 = vsyncadd [#allocation6], %s48
      %s50 = sshll.u32 [#allocation7], 4
      %s51 = int_to_ptr.vmem [resolvable:$true] %s50
      %56 = dma.hbm_to_vmem [thread:$0]  %s5, 1024, %s51, [#allocation6], 64, 64, 4
    $region25: #{tpu_custom_call.1} parent=1 // pred_fallthru
      _
    // Predicated region
    $region26: #{tpu_custom_call.1} parent=1 // pred_check
      _
    $region27: #{tpu_custom_call.1} parent=1 // pred_check_branch
      %58 = sbr.rel (0) target = $region29
    $region28: #{tpu_custom_call.1} parent=1 // pred_region
      _
    $region29: #{tpu_custom_call.1} parent=1 // pred_fallthru
      _
    // Predicated region
    $region30: #{tpu_custom_call.1} parent=1 // pred_check
      _
    $region31: #{tpu_custom_call.1} parent=1 // pred_check_branch
      %60 = sbr.rel (0) target = $region33
    $region32: #{tpu_custom_call.1} parent=1 // pred_region
      %61 = dma.done [#allocation3], 512
    $region33: #{tpu_custom_call.1} parent=1 // pred_fallthru
      _
    // Predicated region
    $region34: #{tpu_custom_call.1} parent=1 // pred_check
      _
    $region35: #{tpu_custom_call.1} parent=1 // pred_check_branch
      %63 = sbr.rel (0) target = $region37
    $region36: #{tpu_custom_call.1} parent=1 // pred_region
      %64 = dma.done [#allocation6], 3072
    $region37: #{tpu_custom_call.1} parent=1 // pred_fallthru
      _
    // Predicated region
    $region38: #{tpu_custom_call.1} parent=1 // pred_check
      _
    $region39: #{tpu_custom_call.1} parent=1 // pred_check_branch
      %66 = sbr.rel (0) target = $region41
    $region40: #{tpu_custom_call.1} parent=1 // pred_region
      %67 = dma.done [#allocation6], 1024
    $region41: #{tpu_custom_call.1} parent=1 // pred_fallthru
      _
    %v69 = vld [vmem:[%s0] sm:$0xff]
    %v70 = vld [vmem:[%s0 + $0x8] sm:$0xff]
    %v71 = vld [vmem:[%s0 + $0x10] sm:$0xff]
    %v72 = vld [vmem:[%s0 + $0x18] sm:$0xff]
    %v73 = vld [vmem:[#allocation2] sm:$0xff]
    %v74 = vld [vmem:[#allocation2 + $0x8] sm:$0xff]
    %v75 = vld [vmem:[#allocation2 + $0x10] sm:$0xff]
    %v76 = vld [vmem:[#allocation2 + $0x18] sm:$0xff]
    %v77 = vld [vmem:[%s2] sm:$0xff]
    %v78 = vld [vmem:[%s2 + $0x8] sm:$0xff]
    %v79 = vld [vmem:[%s2 + $0x10] sm:$0xff]
    %v80 = vld [vmem:[%s2 + $0x18] sm:$0xff]
    %v81 = vld [vmem:[#allocation5] sm:$0xff]
    %v82 = vld [vmem:[#allocation5 + $0x8] sm:$0xf]
    %v83 = vld [vmem:[#allocation5 + $0xc] sm:$0xff]
    %v84 = vld [vmem:[#allocation5 + $0x14] sm:$0xf]
    %v85 = vld [vmem:[#allocation5 + $0x18] sm:$0xff]
    %v86 = vld [vmem:[#allocation5 + $0x20] sm:$0xf]
    %v87 = vld [vmem:[#allocation5 + $0x24] sm:$0xff]
    %v88 = vld [vmem:[#allocation5 + $0x2c] sm:$0xf]
    %v89 = vld [vmem:[#allocation5 + $0x30] sm:$0xff]
    %v90 = vld [vmem:[#allocation5 + $0x38] sm:$0xf]
    %v91 = vld [vmem:[#allocation5 + $0x3c] sm:$0xff]
    %v92 = vld [vmem:[#allocation5 + $0x44] sm:$0xf]
    %v93 = vld [vmem:[#allocation5 + $0x48] sm:$0xff]
    %v94 = vld [vmem:[#allocation5 + $0x50] sm:$0xf]
    %v95 = vld [vmem:[#allocation5 + $0x54] sm:$0xff]
    %v96 = vld [vmem:[#allocation5 + $0x5c] sm:$0xf]
    %v97 = vld [vmem:[#allocation5 + $0x60] sm:$0xff]
    %v98 = vld [vmem:[#allocation5 + $0x68] sm:$0xf]
    %v99 = vld [vmem:[#allocation5 + $0x6c] sm:$0xff]
    %v100 = vld [vmem:[#allocation5 + $0x74] sm:$0xf]
    %v101 = vld [vmem:[#allocation5 + $0x78] sm:$0xff]
    %v102 = vld [vmem:[#allocation5 + $0x80] sm:$0xf]
    %v103 = vld [vmem:[#allocation5 + $0x84] sm:$0xff]
    %v104 = vld [vmem:[#allocation5 + $0x8c] sm:$0xf]
    %v105 = vld [vmem:[#allocation5 + $0x90] sm:$0xff]
    %v106 = vld [vmem:[#allocation5 + $0x98] sm:$0xf]
    %v107 = vld [vmem:[#allocation5 + $0x9c] sm:$0xff]
    %v108 = vld [vmem:[#allocation5 + $0xa4] sm:$0xf]
    %v109 = vld [vmem:[#allocation5 + $0xa8] sm:$0xff]
    %v110 = vld [vmem:[#allocation5 + $0xb0] sm:$0xf]
    %v111 = vld [vmem:[#allocation5 + $0xb4] sm:$0xff]
    %v112 = vld [vmem:[#allocation5 + $0xbc] sm:$0xf]
    %v113 = vld [vmem:[%s4] sm:$0x1]
    %v115 = vlaneseq
    %v116 = vshrl.u32 %v115, 7
    %v117 = vsub.s32 0, %v116
    %v118 = vrot.slane %v113, %v117
    %v120 = vpack.c.bf16 %v70, %v69
    %v121 = vpack.c.bf16 %v72, %v71
    %v154 = vunpack.c.l.b16 %v81
    %v155 = vunpack.c.h.b16 %v81
    %v156 = vunpack.c.l.b16 %v82
    %v157 = vunpack.c.l.b16 %v83
    %v158 = vunpack.c.h.b16 %v83
    %v159 = vunpack.c.l.b16 %v84
    %v160 = vunpack.c.l.b16 %v85
    %v161 = vunpack.c.h.b16 %v85
    %v162 = vunpack.c.l.b16 %v86
    %v163 = vunpack.c.l.b16 %v87
    %v164 = vunpack.c.h.b16 %v87
    %v165 = vunpack.c.l.b16 %v88
    %v166 = vunpack.c.l.b16 %v89
    %v167 = vunpack.c.h.b16 %v89
    %v168 = vunpack.c.l.b16 %v90
    %v169 = vunpack.c.l.b16 %v91
    %v170 = vunpack.c.h.b16 %v91
    %v171 = vunpack.c.l.b16 %v92
    %v172 = vunpack.c.l.b16 %v93
    %v173 = vunpack.c.h.b16 %v93
    %v174 = vunpack.c.l.b16 %v94
    %v175 = vunpack.c.l.b16 %v95
    %v176 = vunpack.c.h.b16 %v95
    %v177 = vunpack.c.l.b16 %v96
    %v178 = vunpack.c.l.b16 %v97
    %v179 = vunpack.c.h.b16 %v97
    %v180 = vunpack.c.l.b16 %v98
    %v181 = vunpack.c.l.b16 %v99
    %v182 = vunpack.c.h.b16 %v99
    %v183 = vunpack.c.l.b16 %v100
    %v184 = vunpack.c.l.b16 %v101
    %v185 = vunpack.c.h.b16 %v101
    %v186 = vunpack.c.l.b16 %v102
    %v187 = vunpack.c.l.b16 %v103
    %v188 = vunpack.c.h.b16 %v103
    %v189 = vunpack.c.l.b16 %v104
    %v190 = vunpack.c.l.b16 %v105
    %v191 = vunpack.c.h.b16 %v105
    %v192 = vunpack.c.l.b16 %v106
    %v193 = vunpack.c.l.b16 %v107
    %v194 = vunpack.c.h.b16 %v107
    %v195 = vunpack.c.l.b16 %v108
    %v196 = vunpack.c.l.b16 %v109
    %v197 = vunpack.c.h.b16 %v109
    %v198 = vunpack.c.l.b16 %v110
    %v199 = vunpack.c.l.b16 %v111
    %v200 = vunpack.c.h.b16 %v111
    %v201 = vunpack.c.l.b16 %v112
    %v202 = vpack.c.b16 %v157, %v154
    %v203 = vpack.c.b16 %v158, %v155
    %v204 = vpack.c.b16 %v159, %v156
    %v205 = vpack.c.b16 %v163, %v160
    %v206 = vpack.c.b16 %v164, %v161
    %v207 = vpack.c.b16 %v165, %v162
    %v208 = vpack.c.b16 %v169, %v166
    %v209 = vpack.c.b16 %v170, %v167
    %v210 = vpack.c.b16 %v171, %v168
    %v211 = vpack.c.b16 %v175, %v172
    %v212 = vpack.c.b16 %v176, %v173
    %v213 = vpack.c.b16 %v177, %v174
    %v214 = vpack.c.b16 %v181, %v178
    %v215 = vpack.c.b16 %v182, %v179
    %v216 = vpack.c.b16 %v183, %v180
    %v217 = vpack.c.b16 %v187, %v184
    %v218 = vpack.c.b16 %v188, %v185
    %v219 = vpack.c.b16 %v189, %v186
    %v220 = vpack.c.b16 %v193, %v190
    %v221 = vpack.c.b16 %v194, %v191
    %v222 = vpack.c.b16 %v195, %v192
    %v223 = vpack.c.b16 %v199, %v196
    %v224 = vpack.c.b16 %v200, %v197
    %v225 = vpack.c.b16 %v201, %v198
    %250 = vmatprep.subr.bf16.mxu0 %v224
    %251 = vmatpush1.bf16.msra.mxu0 %v223
    %252 = vmatprep.subr.bf16.mxu0 %v221
    %253 = vmatpush1.bf16.msra.mxu0 %v220
    %254 = vmatprep.subr.bf16.mxu0 %v218
    %255 = vmatpush1.bf16.msra.mxu0 %v217
    %256 = vmatprep.subr.bf16.mxu0 %v215
    %257 = vmatpush1.bf16.msra.mxu0 %v214
    %258 = vmatprep.subr.bf16.mxu0 %v212
    %259 = vmatpush1.bf16.msra.mxu0 %v211
    %260 = vmatprep.subr.bf16.mxu0 %v209
    %261 = vmatpush1.bf16.msra.mxu0 %v208
    %262 = vmatprep.subr.bf16.mxu0 %v206
    %263 = vmatpush1.bf16.msra.mxu0 %v205
    %264 = vmatprep.subr.bf16.mxu0 %v203
    %265 = vmatpush1.bf16.msra.mxu0 %v202
    %266 = vmatprep.subr.bf16.mxu0 0
    %267 = vmatpush2.bf16.msra.mxu0 0
    %268 = vmatprep.subr.bf16.mxu0 0
    %269 = vmatpush2.bf16.msra.mxu0 0
    %270 = vmatprep.subr.bf16.mxu0 0
    %271 = vmatpush2.bf16.msra.mxu0 0
    %272 = vmatprep.subr.bf16.mxu0 0
    %273 = vmatpush2.bf16.msra.mxu0 0
    %274 = vmatprep.subr.bf16.mxu0 0
    %275 = vmatpush2.bf16.msra.mxu0 0
    %276 = vmatprep.subr.bf16.mxu0 0
    %277 = vmatpush2.bf16.msra.mxu0 0
    %278 = vmatprep.subr.bf16.mxu0 0
    %279 = vmatpush2.bf16.msra.mxu0 0
    %280 = vmatprep.subr.bf16.mxu0 0
    %281 = vmatpush2.bf16.msra.mxu0 0
    %282 = vmatprep.mubr.bf16.mxu0 0
    %283 = vmatmul.mubr.bf16.gmra.mxu0 %v120
    %v284 = vpop.f32.mrf.mxu0
    %v285 = vadd.f32 0.0, %v284
    %v286 = vpop.f32.mrf.mxu0
    %v287 = vadd.f32 0.0, %v286
    %v288 = vpop.f32.mrf.mxu0
    %v289 = vadd.f32 0.0, %v288
    %v290 = vpop.f32.mrf.mxu0
    %v291 = vadd.f32 0.0, %v290
    %292 = vmatprep.mubr.bf16.mxu0 0
    %293 = vmatmul.mubr.bf16.gmra.mxu0 %v121
    %v294 = vpop.f32.mrf.mxu0
    %v295 = vadd.f32 0.0, %v294
    %v296 = vpop.f32.mrf.mxu0
    %v297 = vadd.f32 0.0, %v296
    %v298 = vpop.f32.mrf.mxu0
    %v299 = vadd.f32 0.0, %v298
    %v300 = vpop.f32.mrf.mxu0
    %v301 = vadd.f32 0.0, %v300
    %302 = vdwg.mxu0
    %303 = vmatprep.subr.bf16.mxu0 0
    %304 = vmatpush1.bf16.msra.mxu0 %v225
    %305 = vmatprep.subr.bf16.mxu0 0
    %306 = vmatpush1.bf16.msra.mxu0 %v222
    %307 = vmatprep.subr.bf16.mxu0 0
    %308 = vmatpush1.bf16.msra.mxu0 %v219
    %309 = vmatprep.subr.bf16.mxu0 0
    %310 = vmatpush1.bf16.msra.mxu0 %v216
    %311 = vmatprep.subr.bf16.mxu0 0
    %312 = vmatpush1.bf16.msra.mxu0 %v213
    %313 = vmatprep.subr.bf16.mxu0 0
    %314 = vmatpush1.bf16.msra.mxu0 %v210
    %315 = vmatprep.subr.bf16.mxu0 0
    %316 = vmatpush1.bf16.msra.mxu0 %v207
    %317 = vmatprep.subr.bf16.mxu0 0
    %318 = vmatpush1.bf16.msra.mxu0 %v204
    %319 = vmatprep.subr.bf16.mxu0 0
    %320 = vmatpush2.bf16.msra.mxu0 0
    %321 = vmatprep.subr.bf16.mxu0 0
    %322 = vmatpush2.bf16.msra.mxu0 0
    %323 = vmatprep.subr.bf16.mxu0 0
    %324 = vmatpush2.bf16.msra.mxu0 0
    %325 = vmatprep.subr.bf16.mxu0 0
    %326 = vmatpush2.bf16.msra.mxu0 0
    %327 = vmatprep.subr.bf16.mxu0 0
    %328 = vmatpush2.bf16.msra.mxu0 0
    %329 = vmatprep.subr.bf16.mxu0 0
    %330 = vmatpush2.bf16.msra.mxu0 0
    %331 = vmatprep.subr.bf16.mxu0 0
    %332 = vmatpush2.bf16.msra.mxu0 0
    %333 = vmatprep.subr.bf16.mxu0 0
    %334 = vmatpush2.bf16.msra.mxu0 0
    %335 = vmatprep.mubr.bf16.mxu0 0
    %336 = vmatmul.mubr.bf16.gmra.mxu0 %v120
    %v337 = vpop.f32.mrf.mxu0
    %v338 = vadd.f32 0.0, %v337
    %v339 = vpop.f32.mrf.mxu0
    %v340 = vpop.f32.mrf.mxu0
    %v341 = vadd.f32 0.0, %v340
    %v342 = vpop.f32.mrf.mxu0
    %343 = vmatprep.mubr.bf16.mxu0 0
    %344 = vmatmul.mubr.bf16.gmra.mxu0 %v121
    %v345 = vpop.f32.mrf.mxu0
    %v346 = vadd.f32 0.0, %v345
    %v347 = vpop.f32.mrf.mxu0
    %v348 = vpop.f32.mrf.mxu0
    %v349 = vadd.f32 0.0, %v348
    %v350 = vpop.f32.mrf.mxu0
    %351 = vdwg.mxu0
    %v352 = vtanh.pop %v338
    %v353 = vtanh.pop %v341
    %v354 = vtanh.pop %v346
    %v355 = vtanh.pop %v349
    %v356 = vpack.c.bf16 %v289, %v285
    %v357 = vpack.c.bf16 %v299, %v295
    %v358 = vpack.c.bf16 %v291, %v287
    %v359 = vpack.c.bf16 %v301, %v297
    %360 = vmatprep.subr.bf16.mxu0 0
    %361 = vmatpush1.bf16.xpose.msra.mxu0 0
    %362 = vmatprep.subr.bf16.mxu0 0
    %363 = vmatpush1.bf16.xpose.msra.mxu0 0
    %364 = vmatprep.subr.bf16.mxu0 0
    %365 = vmatpush1.bf16.xpose.msra.mxu0 0
    %366 = vmatprep.subr.bf16.mxu0 0
    %367 = vmatpush1.bf16.xpose.msra.mxu0 0
    %368 = vmatprep.subr.bf16.mxu0 0
    %369 = vmatpush1.bf16.xpose.msra.mxu0 0
    %370 = vmatprep.subr.bf16.mxu0 0
    %371 = vmatpush1.bf16.xpose.msra.mxu0 0
    %372 = vmatprep.subr.bf16.mxu0 0
    %373 = vmatpush1.bf16.xpose.msra.mxu0 %v359
    %374 = vmatprep.subr.bf16.mxu0 0
    %375 = vmatpush1.bf16.xpose.msra.mxu0 %v358
    %376 = vmatprep.subr.bf16.mxu0 0
    %377 = vmatpush2.bf16.xpose.msra.mxu0 0
    %378 = vmatprep.subr.bf16.mxu0 0
    %379 = vmatpush2.bf16.xpose.msra.mxu0 0
    %380 = vmatprep.subr.bf16.mxu0 0
    %381 = vmatpush2.bf16.xpose.msra.mxu0 0
    %382 = vmatprep.subr.bf16.mxu0 0
    %383 = vmatpush2.bf16.xpose.msra.mxu0 0
    %384 = vmatprep.subr.bf16.mxu0 0
    %385 = vmatpush2.bf16.xpose.msra.mxu0 0
    %386 = vmatprep.subr.bf16.mxu0 0
    %387 = vmatpush2.bf16.xpose.msra.mxu0 0
    %388 = vmatprep.subr.bf16.mxu0 0
    %389 = vmatpush2.bf16.xpose.msra.mxu0 0
    %390 = vmatprep.subr.bf16.mxu0 0
    %391 = vmatpush2.bf16.xpose.msra.mxu0 0
    %392 = vmatprep.mubr.bf16.mxu0 0
    %393 = vmatmul.mubr.bf16.gmra.mxu0 %v356
    %v394 = vpop.f32.mrf.mxu0
    %v395 = vadd.f32 0.0, %v394
    %v396 = vpop.f32.mrf.mxu0
    %v397 = vpop.f32.mrf.mxu0
    %v398 = vadd.f32 0.0, %v397
    %v399 = vpop.f32.mrf.mxu0
    %400 = vmatprep.mubr.bf16.mxu0 0
    %401 = vmatmul.mubr.bf16.gmra.mxu0 %v357
    %v402 = vpop.f32.mrf.mxu0
    %v403 = vadd.f32 0.0, %v402
    %v404 = vpop.f32.mrf.mxu0
    %v405 = vpop.f32.mrf.mxu0
    %v406 = vadd.f32 0.0, %v405
    %v407 = vpop.f32.mrf.mxu0
    %408 = vdwg.mxu0
    %v409 = vmul.f32 %v395, 0.125
    %v410 = vmul.f32 %v398, 0.125
    %v411 = vmul.f32 %v403, 0.125
    %v412 = vmul.f32 %v406, 0.125
    %v413 = vadd.f32 %v409, %v73
    %v414 = vadd.f32 %v410, %v74
    %v415 = vadd.f32 %v411, %v75
    %v416 = vadd.f32 %v412, %v76
    %vm417 = vcmask 261120
    %v418 = vsel %vm417, %v413, -inf
    %419 = vmax.xlane.f32.xlu0 %v418
    %v420 = vpop.xlane.xlu0 %419
    %v421 = vsel %vm417, %v414, -inf
    %422 = vmax.xlane.f32.xlu0 %v421
    %v423 = vpop.xlane.xlu0 %422
    %v424 = vsel %vm417, %v415, -inf
    %425 = vmax.xlane.f32.xlu0 %v424
    %v426 = vpop.xlane.xlu0 %425
    %v427 = vsel %vm417, %v416, -inf
    %428 = vmax.xlane.f32.xlu0 %v427
    %v429 = vpop.xlane.xlu0 %428
    %v430 = vsub.f32 %v413, %v420
    %v431 = vsub.f32 %v414, %v423
    %v432 = vsub.f32 %v415, %v426
    %v433 = vsub.f32 %v416, %v429
    %v434 = vmul.f32 %v430, 1.442695
    %v435 = vpow.pop %v434
    %v436 = vmul.f32 %v431, 1.442695
    %v437 = vpow.pop %v436
    %v438 = vmul.f32 %v432, 1.442695
    %v439 = vpow.pop %v438
    %v440 = vmul.f32 %v433, 1.442695
    %v441 = vpow.pop %v440
    %v442 = vsel %vm417, %v435, 0.0
    %443 = vadd.xlane.f32.xlu0 %v442
    %v444 = vpop.xlane.xlu0 %443
    %v445 = vsel %vm417, %v437, 0.0
    %446 = vadd.xlane.f32.xlu0 %v445
    %v447 = vpop.xlane.xlu0 %446
    %v448 = vsel %vm417, %v439, 0.0
    %449 = vadd.xlane.f32.xlu0 %v448
    %v450 = vpop.xlane.xlu0 %449
    %v451 = vsel %vm417, %v441, 0.0
    %452 = vadd.xlane.f32.xlu0 %v451
    %v453 = vpop.xlane.xlu0 %452
    %v454 = vpack.c.bf16 %v437, %v435
    %v455 = vpack.c.bf16 %v441, %v439
    %v456 = vpack.c.bf16 %v353, %v352
    %v457 = vpack.c.bf16 %v355, %v354
    %v459 = vsel %vm417, %v454, 0
    %v462 = vsel %vm417, %v455, 0
    %464 = vmatprep.subr.bf16.mxu0 0
    %465 = vmatpush1.bf16.msra.mxu0 0
    %466 = vmatprep.subr.bf16.mxu0 0
    %467 = vmatpush1.bf16.msra.mxu0 0
    %468 = vmatprep.subr.bf16.mxu0 0
    %469 = vmatpush1.bf16.msra.mxu0 0
    %470 = vmatprep.subr.bf16.mxu0 0
    %471 = vmatpush1.bf16.msra.mxu0 0
    %472 = vmatprep.subr.bf16.mxu0 0
    %473 = vmatpush1.bf16.msra.mxu0 0
    %474 = vmatprep.subr.bf16.mxu0 0
    %475 = vmatpush1.bf16.msra.mxu0 0
    %476 = vmatprep.subr.bf16.mxu0 0
    %477 = vmatpush1.bf16.msra.mxu0 %v457
    %478 = vmatprep.subr.bf16.mxu0 0
    %479 = vmatpush1.bf16.msra.mxu0 %v456
    %480 = vmatprep.subr.bf16.mxu0 0
    %481 = vmatpush2.bf16.msra.mxu0 0
    %482 = vmatprep.subr.bf16.mxu0 0
    %483 = vmatpush2.bf16.msra.mxu0 0
    %484 = vmatprep.subr.bf16.mxu0 0
    %485 = vmatpush2.bf16.msra.mxu0 0
    %486 = vmatprep.subr.bf16.mxu0 0
    %487 = vmatpush2.bf16.msra.mxu0 0
    %488 = vmatprep.subr.bf16.mxu0 0
    %489 = vmatpush2.bf16.msra.mxu0 0
    %490 = vmatprep.subr.bf16.mxu0 0
    %491 = vmatpush2.bf16.msra.mxu0 0
    %492 = vmatprep.subr.bf16.mxu0 0
    %493 = vmatpush2.bf16.msra.mxu0 0
    %494 = vmatprep.subr.bf16.mxu0 0
    %495 = vmatpush2.bf16.msra.mxu0 0
    %496 = vmatprep.mubr.bf16.mxu0 0
    %497 = vmatmul.mubr.bf16.gmra.mxu0 %v459
    %v498 = vpop.f32.mrf.mxu0
    %v499 = vadd.f32 0.0, %v498
    %v500 = vpop.f32.mrf.mxu0
    %v501 = vpop.f32.mrf.mxu0
    %v502 = vadd.f32 0.0, %v501
    %v503 = vpop.f32.mrf.mxu0
    %504 = vmatprep.mubr.bf16.mxu0 0
    %505 = vmatmul.mubr.bf16.gmra.mxu0 %v462
    %v506 = vpop.f32.mrf.mxu0
    %v507 = vadd.f32 0.0, %v506
    %v508 = vpop.f32.mrf.mxu0
    %v509 = vpop.f32.mrf.mxu0
    %v510 = vadd.f32 0.0, %v509
    %v511 = vpop.f32.mrf.mxu0
    %512 = vdwg.mxu0
    %v513 = vrcp.pop %v444
    %v514 = vrcp.pop %v447
    %v515 = vrcp.pop %v450
    %v516 = vrcp.pop %v453
    %v517 = vmul.f32 %v77, %v513
    %v518 = vmul.f32 %v78, %v514
    %v519 = vmul.f32 %v79, %v515
    %v520 = vmul.f32 %v80, %v516
    %522 = vset.pattern.permute.xlu0 0
    %523 = vperm.xlu0 %522, %v517
    %v524 = vpop.permute.xlu0 %523
    %527 = vset.pattern.permute.xlu0 0
    %528 = vperm.xlu0 %527, %v518
    %v529 = vpop.permute.xlu0 %528
    %532 = vset.pattern.permute.xlu0 0
    %533 = vperm.xlu0 %532, %v519
    %v534 = vpop.permute.xlu0 %533
    %537 = vset.pattern.permute.xlu0 0
    %538 = vperm.xlu0 %537, %v520
    %v539 = vpop.permute.xlu0 %538
    %v541 = vmul.f32 %v499, %v524
    %v542 = vmul.f32 %v502, %v529
    %v543 = vmul.f32 %v507, %v534
    %v544 = vmul.f32 %v510, %v539
    %v545 = vadd.f32 %v541, %v118
    %v546 = vadd.f32 %v542, %v118
    %v547 = vadd.f32 %v543, %v118
    %v548 = vadd.f32 %v544, %v118
    %v549 = vpack.c.bf16 %v546, %v545
    %v550 = vpack.c.bf16 %v548, %v547
    %551 = vmatprep.subr.bf16.mxu0 %v224
    %552 = vmatpush1.bf16.msra.mxu0 %v223
    %553 = vmatprep.subr.bf16.mxu0 %v221
    %554 = vmatpush1.bf16.msra.mxu0 %v220
    %555 = vmatprep.subr.bf16.mxu0 %v218
    %556 = vmatpush1.bf16.msra.mxu0 %v217
    %557 = vmatprep.subr.bf16.mxu0 %v215
    %558 = vmatpush1.bf16.msra.mxu0 %v214
    %559 = vmatprep.subr.bf16.mxu0 %v212
    %560 = vmatpush1.bf16.msra.mxu0 %v211
    %561 = vmatprep.subr.bf16.mxu0 %v209
    %562 = vmatpush1.bf16.msra.mxu0 %v208
    %563 = vmatprep.subr.bf16.mxu0 %v206
    %564 = vmatpush1.bf16.msra.mxu0 %v205
    %565 = vmatprep.subr.bf16.mxu0 %v203
    %566 = vmatpush1.bf16.msra.mxu0 %v202
    %567 = vmatprep.subr.bf16.mxu0 0
    %568 = vmatpush2.bf16.msra.mxu0 0
    %569 = vmatprep.subr.bf16.mxu0 0
    %570 = vmatpush2.bf16.msra.mxu0 0
    %571 = vmatprep.subr.bf16.mxu0 0
    %572 = vmatpush2.bf16.msra.mxu0 0
    %573 = vmatprep.subr.bf16.mxu0 0
    %574 = vmatpush2.bf16.msra.mxu0 0
    %575 = vmatprep.subr.bf16.mxu0 0
    %576 = vmatpush2.bf16.msra.mxu0 0
    %577 = vmatprep.subr.bf16.mxu0 0
    %578 = vmatpush2.bf16.msra.mxu0 0
    %579 = vmatprep.subr.bf16.mxu0 0
    %580 = vmatpush2.bf16.msra.mxu0 0
    %581 = vmatprep.subr.bf16.mxu0 0
    %582 = vmatpush2.bf16.msra.mxu0 0
    %583 = vmatprep.mubr.bf16.mxu0 0
    %584 = vmatmul.mubr.bf16.gmra.mxu0 %v549
    %v585 = vpop.f32.mrf.mxu0
    %v586 = vadd.f32 0.0, %v585
    %v587 = vpop.f32.mrf.mxu0
    %v588 = vadd.f32 0.0, %v587
    %v589 = vpop.f32.mrf.mxu0
    %v590 = vadd.f32 0.0, %v589
    %v591 = vpop.f32.mrf.mxu0
    %v592 = vadd.f32 0.0, %v591
    %593 = vmatprep.mubr.bf16.mxu0 0
    %594 = vmatmul.mubr.bf16.gmra.mxu0 %v550
    %v595 = vpop.f32.mrf.mxu0
    %v596 = vadd.f32 0.0, %v595
    %v597 = vpop.f32.mrf.mxu0
    %v598 = vadd.f32 0.0, %v597
    %v599 = vpop.f32.mrf.mxu0
    %v600 = vadd.f32 0.0, %v599
    %v601 = vpop.f32.mrf.mxu0
    %v602 = vadd.f32 0.0, %v601
    %603 = vdwg.mxu0
    %604 = vmatprep.subr.bf16.mxu0 0
    %605 = vmatpush1.bf16.msra.mxu0 %v225
    %606 = vmatprep.subr.bf16.mxu0 0
    %607 = vmatpush1.bf16.msra.mxu0 %v222
    %608 = vmatprep.subr.bf16.mxu0 0
    %609 = vmatpush1.bf16.msra.mxu0 %v219
    %610 = vmatprep.subr.bf16.mxu0 0
    %611 = vmatpush1.bf16.msra.mxu0 %v216
    %612 = vmatprep.subr.bf16.mxu0 0
    %613 = vmatpush1.bf16.msra.mxu0 %v213
    %614 = vmatprep.subr.bf16.mxu0 0
    %615 = vmatpush1.bf16.msra.mxu0 %v210
    %616 = vmatprep.subr.bf16.mxu0 0
    %617 = vmatpush1.bf16.msra.mxu0 %v207
    %618 = vmatprep.subr.bf16.mxu0 0
    %619 = vmatpush1.bf16.msra.mxu0 %v204
    %620 = vmatprep.subr.bf16.mxu0 0
    %621 = vmatpush2.bf16.msra.mxu0 0
    %622 = vmatprep.subr.bf16.mxu0 0
    %623 = vmatpush2.bf16.msra.mxu0 0
    %624 = vmatprep.subr.bf16.mxu0 0
    %625 = vmatpush2.bf16.msra.mxu0 0
    %626 = vmatprep.subr.bf16.mxu0 0
    %627 = vmatpush2.bf16.msra.mxu0 0
    %628 = vmatprep.subr.bf16.mxu0 0
    %629 = vmatpush2.bf16.msra.mxu0 0
    %630 = vmatprep.subr.bf16.mxu0 0
    %631 = vmatpush2.bf16.msra.mxu0 0
    %632 = vmatprep.subr.bf16.mxu0 0
    %633 = vmatpush2.bf16.msra.mxu0 0
    %634 = vmatprep.subr.bf16.mxu0 0
    %635 = vmatpush2.bf16.msra.mxu0 0
    %636 = vmatprep.mubr.bf16.mxu0 0
    %637 = vmatmul.mubr.bf16.gmra.mxu0 %v549
    %v638 = vpop.f32.mrf.mxu0
    %v639 = vadd.f32 0.0, %v638
    %v640 = vpop.f32.mrf.mxu0
    %v641 = vpop.f32.mrf.mxu0
    %v642 = vadd.f32 0.0, %v641
    %v643 = vpop.f32.mrf.mxu0
    %644 = vmatprep.mubr.bf16.mxu0 0
    %645 = vmatmul.mubr.bf16.gmra.mxu0 %v550
    %v646 = vpop.f32.mrf.mxu0
    %v647 = vadd.f32 0.0, %v646
    %v648 = vpop.f32.mrf.mxu0
    %v649 = vpop.f32.mrf.mxu0
    %v650 = vadd.f32 0.0, %v649
    %v651 = vpop.f32.mrf.mxu0
    %652 = vdwg.mxu0
    %v653 = vtanh.pop %v639
    %v654 = vtanh.pop %v642
    %v655 = vtanh.pop %v647
    %v656 = vtanh.pop %v650
    %v657 = vpack.c.bf16 %v590, %v586
    %v658 = vpack.c.bf16 %v600, %v596
    %v659 = vpack.c.bf16 %v592, %v588
    %v660 = vpack.c.bf16 %v602, %v598
    %661 = vmatprep.subr.bf16.mxu0 0
    %662 = vmatpush1.bf16.xpose.msra.mxu0 0
    %663 = vmatprep.subr.bf16.mxu0 0
    %664 = vmatpush1.bf16.xpose.msra.mxu0 0
    %665 = vmatprep.subr.bf16.mxu0 0
    %666 = vmatpush1.bf16.xpose.msra.mxu0 0
    %667 = vmatprep.subr.bf16.mxu0 0
    %668 = vmatpush1.bf16.xpose.msra.mxu0 0
    %669 = vmatprep.subr.bf16.mxu0 0
    %670 = vmatpush1.bf16.xpose.msra.mxu0 0
    %671 = vmatprep.subr.bf16.mxu0 0
    %672 = vmatpush1.bf16.xpose.msra.mxu0 0
    %673 = vmatprep.subr.bf16.mxu0 0
    %674 = vmatpush1.bf16.xpose.msra.mxu0 %v660
    %675 = vmatprep.subr.bf16.mxu0 0
    %676 = vmatpush1.bf16.xpose.msra.mxu0 %v659
    %677 = vmatprep.subr.bf16.mxu0 0
    %678 = vmatpush2.bf16.xpose.msra.mxu0 0
    %679 = vmatprep.subr.bf16.mxu0 0
    %680 = vmatpush2.bf16.xpose.msra.mxu0 0
    %681 = vmatprep.subr.bf16.mxu0 0
    %682 = vmatpush2.bf16.xpose.msra.mxu0 0
    %683 = vmatprep.subr.bf16.mxu0 0
    %684 = vmatpush2.bf16.xpose.msra.mxu0 0
    %685 = vmatprep.subr.bf16.mxu0 0
    %686 = vmatpush2.bf16.xpose.msra.mxu0 0
    %687 = vmatprep.subr.bf16.mxu0 0
    %688 = vmatpush2.bf16.xpose.msra.mxu0 0
    %689 = vmatprep.subr.bf16.mxu0 0
    %690 = vmatpush2.bf16.xpose.msra.mxu0 0
    %691 = vmatprep.subr.bf16.mxu0 0
    %692 = vmatpush2.bf16.xpose.msra.mxu0 0
    %693 = vmatprep.mubr.bf16.mxu0 0
    %694 = vmatmul.mubr.bf16.gmra.mxu0 %v657
    %v695 = vpop.f32.mrf.mxu0
    %v696 = vadd.f32 0.0, %v695
    %v697 = vpop.f32.mrf.mxu0
    %v698 = vpop.f32.mrf.mxu0
    %v699 = vadd.f32 0.0, %v698
    %v700 = vpop.f32.mrf.mxu0
    %701 = vmatprep.mubr.bf16.mxu0 0
    %702 = vmatmul.mubr.bf16.gmra.mxu0 %v658
    %v703 = vpop.f32.mrf.mxu0
    %v704 = vadd.f32 0.0, %v703
    %v705 = vpop.f32.mrf.mxu0
    %v706 = vpop.f32.mrf.mxu0
    %v707 = vadd.f32 0.0, %v706
    %v708 = vpop.f32.mrf.mxu0
    %709 = vdwg.mxu0
    %v710 = vmul.f32 %v696, 0.125
    %v711 = vmul.f32 %v699, 0.125
    %v712 = vmul.f32 %v704, 0.125
    %v713 = vmul.f32 %v707, 0.125
    %v714 = vadd.f32 %v710, %v73
    %v715 = vadd.f32 %v711, %v74
    %v716 = vadd.f32 %v712, %v75
    %v717 = vadd.f32 %v713, %v76
    %v718 = vsel %vm417, %v714, -inf
    %719 = vmax.xlane.f32.xlu0 %v718
    %v720 = vpop.xlane.xlu0 %719
    %v721 = vsel %vm417, %v715, -inf
    %722 = vmax.xlane.f32.xlu0 %v721
    %v723 = vpop.xlane.xlu0 %722
    %v724 = vsel %vm417, %v716, -inf
    %725 = vmax.xlane.f32.xlu0 %v724
    %v726 = vpop.xlane.xlu0 %725
    %v727 = vsel %vm417, %v717, -inf
    %728 = vmax.xlane.f32.xlu0 %v727
    %v729 = vpop.xlane.xlu0 %728
    %v730 = vsub.f32 %v714, %v720
    %v731 = vsub.f32 %v715, %v723
    %v732 = vsub.f32 %v716, %v726
    %v733 = vsub.f32 %v717, %v729
    %v734 = vmul.f32 %v730, 1.442695
    %v735 = vpow.pop %v734
    %v736 = vmul.f32 %v731, 1.442695
    %v737 = vpow.pop %v736
    %v738 = vmul.f32 %v732, 1.442695
    %v739 = vpow.pop %v738
    %v740 = vmul.f32 %v733, 1.442695
    %v741 = vpow.pop %v740
    %v742 = vsel %vm417, %v735, 0.0
    %743 = vadd.xlane.f32.xlu0 %v742
    %v744 = vpop.xlane.xlu0 %743
    %v745 = vsel %vm417, %v737, 0.0
    %746 = vadd.xlane.f32.xlu0 %v745
    %v747 = vpop.xlane.xlu0 %746
    %v748 = vsel %vm417, %v739, 0.0
    %749 = vadd.xlane.f32.xlu0 %v748
    %v750 = vpop.xlane.xlu0 %749
    %v751 = vsel %vm417, %v741, 0.0
    %752 = vadd.xlane.f32.xlu0 %v751
    %v753 = vpop.xlane.xlu0 %752
    %v754 = vpack.c.bf16 %v737, %v735
    %v755 = vpack.c.bf16 %v741, %v739
    %v756 = vpack.c.bf16 %v654, %v653
    %v757 = vpack.c.bf16 %v656, %v655
    %v759 = vsel %vm417, %v754, 0
    %v762 = vsel %vm417, %v755, 0
    %764 = vmatprep.subr.bf16.mxu0 0
    %765 = vmatpush1.bf16.msra.mxu0 0
    %766 = vmatprep.subr.bf16.mxu0 0
    %767 = vmatpush1.bf16.msra.mxu0 0
    %768 = vmatprep.subr.bf16.mxu0 0
    %769 = vmatpush1.bf16.msra.mxu0 0
    %770 = vmatprep.subr.bf16.mxu0 0
    %771 = vmatpush1.bf16.msra.mxu0 0
    %772 = vmatprep.subr.bf16.mxu0 0
    %773 = vmatpush1.bf16.msra.mxu0 0
    %774 = vmatprep.subr.bf16.mxu0 0
    %775 = vmatpush1.bf16.msra.mxu0 0
    %776 = vmatprep.subr.bf16.mxu0 0
    %777 = vmatpush1.bf16.msra.mxu0 %v757
    %778 = vmatprep.subr.bf16.mxu0 0
    %779 = vmatpush1.bf16.msra.mxu0 %v756
    %780 = vmatprep.subr.bf16.mxu0 0
    %781 = vmatpush2.bf16.msra.mxu0 0
    %782 = vmatprep.subr.bf16.mxu0 0
    %783 = vmatpush2.bf16.msra.mxu0 0
    %784 = vmatprep.subr.bf16.mxu0 0
    %785 = vmatpush2.bf16.msra.mxu0 0
    %786 = vmatprep.subr.bf16.mxu0 0
    %787 = vmatpush2.bf16.msra.mxu0 0
    %788 = vmatprep.subr.bf16.mxu0 0
    %789 = vmatpush2.bf16.msra.mxu0 0
    %790 = vmatprep.subr.bf16.mxu0 0
    %791 = vmatpush2.bf16.msra.mxu0 0
    %792 = vmatprep.subr.bf16.mxu0 0
    %793 = vmatpush2.bf16.msra.mxu0 0
    %794 = vmatprep.subr.bf16.mxu0 0
    %795 = vmatpush2.bf16.msra.mxu0 0
    %796 = vmatprep.mubr.bf16.mxu0 0
    %797 = vmatmul.mubr.bf16.gmra.mxu0 %v759
    %v798 = vpop.f32.mrf.mxu0
    %v799 = vadd.f32 0.0, %v798
    %v800 = vpop.f32.mrf.mxu0
    %v801 = vpop.f32.mrf.mxu0
    %v802 = vadd.f32 0.0, %v801
    %v803 = vpop.f32.mrf.mxu0
    %804 = vmatprep.mubr.bf16.mxu0 0
    %805 = vmatmul.mubr.bf16.gmra.mxu0 %v762
    %v806 = vpop.f32.mrf.mxu0
    %v807 = vadd.f32 0.0, %v806
    %v808 = vpop.f32.mrf.mxu0
    %v809 = vpop.f32.mrf.mxu0
    %v810 = vadd.f32 0.0, %v809
    %v811 = vpop.f32.mrf.mxu0
    %812 = vdwg.mxu0
    %v813 = vrcp.pop %v744
    %v814 = vrcp.pop %v747
    %v815 = vrcp.pop %v750
    %v816 = vrcp.pop %v753
    %v817 = vmul.f32 %v77, %v813
    %v818 = vmul.f32 %v78, %v814
    %v819 = vmul.f32 %v79, %v815
    %v820 = vmul.f32 %v80, %v816
    %822 = vset.pattern.permute.xlu0 0
    %823 = vperm.xlu0 %822, %v817
    %v824 = vpop.permute.xlu0 %823
    %827 = vset.pattern.permute.xlu0 0
    %828 = vperm.xlu0 %827, %v818
    %v829 = vpop.permute.xlu0 %828
    %832 = vset.pattern.permute.xlu0 0
    %833 = vperm.xlu0 %832, %v819
    %v834 = vpop.permute.xlu0 %833
    %837 = vset.pattern.permute.xlu0 0
    %838 = vperm.xlu0 %837, %v820
    %v839 = vpop.permute.xlu0 %838
    %v841 = vmul.f32 %v799, %v824
    %v842 = vmul.f32 %v802, %v829
    %v843 = vmul.f32 %v807, %v834
    %v844 = vmul.f32 %v810, %v839
    %v845 = vadd.f32 %v841, %v118
    %v846 = vadd.f32 %v842, %v118
    %v847 = vadd.f32 %v843, %v118
    %v848 = vadd.f32 %v844, %v118
    %v849 = vpack.c.bf16 %v846, %v845
    %v850 = vpack.c.bf16 %v848, %v847
    %v851 = vld [vmem:[#allocation7] sm:$0xf]
    %v852 = vld [vmem:[#allocation7 + $0x4] sm:$0xf]
    %v853 = vld [vmem:[#allocation7 + $0x8] sm:$0xf]
    %v854 = vld [vmem:[#allocation7 + $0xc] sm:$0xf]
    %v855 = vld [vmem:[#allocation7 + $0x10] sm:$0xf]
    %v856 = vld [vmem:[#allocation7 + $0x14] sm:$0xf]
    %v857 = vld [vmem:[#allocation7 + $0x18] sm:$0xf]
    %v858 = vld [vmem:[#allocation7 + $0x1c] sm:$0xf]
    %v859 = vld [vmem:[#allocation7 + $0x20] sm:$0xf]
    %v860 = vld [vmem:[#allocation7 + $0x24] sm:$0xf]
    %v861 = vld [vmem:[#allocation7 + $0x28] sm:$0xf]
    %v862 = vld [vmem:[#allocation7 + $0x2c] sm:$0xf]
    %v863 = vld [vmem:[#allocation7 + $0x30] sm:$0xf]
    %v864 = vld [vmem:[#allocation7 + $0x34] sm:$0xf]
    %v865 = vld [vmem:[#allocation7 + $0x38] sm:$0xf]
    %v866 = vld [vmem:[#allocation7 + $0x3c] sm:$0xf]
    %v867 = vld [vmem:[%s6] sm:$0x1]
    %v869 = vlaneseq
    %v870 = vshrl.u32 %v869, 7
    %v871 = vsub.s32 0, %v870
    %v872 = vrot.slane %v867, %v871
    %v890 = vunpack.c.l.b16 %v851
    %v891 = vunpack.c.l.b16 %v852
    %v892 = vunpack.c.l.b16 %v853
    %v893 = vunpack.c.l.b16 %v854
    %v894 = vunpack.c.l.b16 %v855
    %v895 = vunpack.c.l.b16 %v856
    %v896 = vunpack.c.l.b16 %v857
    %v897 = vunpack.c.l.b16 %v858
    %v898 = vunpack.c.l.b16 %v859
    %v899 = vunpack.c.l.b16 %v860
    %v900 = vunpack.c.l.b16 %v861
    %v901 = vunpack.c.l.b16 %v862
    %v902 = vunpack.c.l.b16 %v863
    %v903 = vunpack.c.l.b16 %v864
    %v904 = vunpack.c.l.b16 %v865
    %v905 = vunpack.c.l.b16 %v866
    %v906 = vpack.c.b16 %v891, %v890
    %v907 = vpack.c.b16 %v893, %v892
    %v908 = vpack.c.b16 %v895, %v894
    %v909 = vpack.c.b16 %v897, %v896
    %v910 = vpack.c.b16 %v899, %v898
    %v911 = vpack.c.b16 %v901, %v900
    %v912 = vpack.c.b16 %v903, %v902
    %v913 = vpack.c.b16 %v905, %v904
    %922 = vmatprep.subr.bf16.mxu0 0
    %923 = vmatpush1.bf16.msra.mxu0 %v913
    %924 = vmatprep.subr.bf16.mxu0 0
    %925 = vmatpush1.bf16.msra.mxu0 %v912
    %926 = vmatprep.subr.bf16.mxu0 0
    %927 = vmatpush1.bf16.msra.mxu0 %v911
    %928 = vmatprep.subr.bf16.mxu0 0
    %929 = vmatpush1.bf16.msra.mxu0 %v910
    %930 = vmatprep.subr.bf16.mxu0 0
    %931 = vmatpush1.bf16.msra.mxu0 %v909
    %932 = vmatprep.subr.bf16.mxu0 0
    %933 = vmatpush1.bf16.msra.mxu0 %v908
    %934 = vmatprep.subr.bf16.mxu0 0
    %935 = vmatpush1.bf16.msra.mxu0 %v907
    %936 = vmatprep.subr.bf16.mxu0 0
    %937 = vmatpush1.bf16.msra.mxu0 %v906
    %938 = vmatprep.subr.bf16.mxu0 0
    %939 = vmatpush2.bf16.msra.mxu0 0
    %940 = vmatprep.subr.bf16.mxu0 0
    %941 = vmatpush2.bf16.msra.mxu0 0
    %942 = vmatprep.subr.bf16.mxu0 0
    %943 = vmatpush2.bf16.msra.mxu0 0
    %944 = vmatprep.subr.bf16.mxu0 0
    %945 = vmatpush2.bf16.msra.mxu0 0
    %946 = vmatprep.subr.bf16.mxu0 0
    %947 = vmatpush2.bf16.msra.mxu0 0
    %948 = vmatprep.subr.bf16.mxu0 0
    %949 = vmatpush2.bf16.msra.mxu0 0
    %950 = vmatprep.subr.bf16.mxu0 0
    %951 = vmatpush2.bf16.msra.mxu0 0
    %952 = vmatprep.subr.bf16.mxu0 0
    %953 = vmatpush2.bf16.msra.mxu0 0
    %954 = vmatprep.mubr.bf16.mxu0 0
    %955 = vmatmul.mubr.bf16.gmra.mxu0 %v849
    %v956 = vpop.f32.mrf.mxu0
    %v957 = vadd.f32 %v872, %v956
    %v958 = vpop.f32.mrf.mxu0
    %v959 = vpop.f32.mrf.mxu0
    %v960 = vadd.f32 %v872, %v959
    %v961 = vpop.f32.mrf.mxu0
    %962 = vmatprep.mubr.bf16.mxu0 0
    %963 = vmatmul.mubr.bf16.gmra.mxu0 %v850
    %v964 = vpop.f32.mrf.mxu0
    %v965 = vadd.f32 %v872, %v964
    %v966 = vpop.f32.mrf.mxu0
    %v967 = vpop.f32.mrf.mxu0
    %v968 = vadd.f32 %v872, %v967
    %v969 = vpop.f32.mrf.mxu0
    %970 = vdwg.mxu0
    %971 = vmax.xlane.f32.xlu0 %v957
    %v972 = vpop.xlane.xlu0 %971
    %973 = vmax.xlane.f32.xlu0 %v960
    %v974 = vpop.xlane.xlu0 %973
    %975 = vmax.xlane.f32.xlu0 %v965
    %v976 = vpop.xlane.xlu0 %975
    %977 = vmax.xlane.f32.xlu0 %v968
    %v978 = vpop.xlane.xlu0 %977
    %v979 = vsub.f32 %v957, %v972
    %v980 = vsub.f32 %v960, %v974
    %v981 = vsub.f32 %v965, %v976
    %v982 = vsub.f32 %v968, %v978
    %v983 = vmul.f32 %v979, 1.442695
    %v984 = vpow.pop %v983
    %v985 = vmul.f32 %v980, 1.442695
    %v986 = vpow.pop %v985
    %v987 = vmul.f32 %v981, 1.442695
    %v988 = vpow.pop %v987
    %v989 = vmul.f32 %v982, 1.442695
    %v990 = vpow.pop %v989
    %991 = vadd.xlane.f32.xlu0 %v984
    %v992 = vpop.xlane.xlu0 %991
    %993 = vadd.xlane.f32.xlu0 %v986
    %v994 = vpop.xlane.xlu0 %993
    %995 = vadd.xlane.f32.xlu0 %v988
    %v996 = vpop.xlane.xlu0 %995
    %997 = vadd.xlane.f32.xlu0 %v990
    %v998 = vpop.xlane.xlu0 %997
    %v999 = vrcp.pop %v992
    %v1000 = vmul.f32 %v984, %v999
    %v1001 = vrcp.pop %v994
    %v1002 = vmul.f32 %v986, %v1001
    %v1003 = vrcp.pop %v996
    %v1004 = vmul.f32 %v988, %v1003
    %v1005 = vrcp.pop %v998
    %v1006 = vmul.f32 %v990, %v1005
    %1007 = vst [vmem:[#allocation8] sm:$0xff] %v1000
    %1008 = vst [vmem:[#allocation8 + $0x8] sm:$0xff] %v1002
    %1009 = vst [vmem:[#allocation8 + $0x10] sm:$0xff] %v1004
    %1010 = vst [vmem:[#allocation8 + $0x18] sm:$0xff] %v1006
    // Predicated region
    $region42: #{tpu_custom_call.1} parent=1 // pred_check
      _
    $region43: #{tpu_custom_call.1} parent=1 // pred_check_branch
      %1012 = sbr.rel (0) target = $region45
    $region44: #{tpu_custom_call.1} parent=1 // pred_region
      %s1014 = ssub.s32 512, 512
      %1015 = vsyncadd [#allocation4], %s1014
      %s1016 = sshll.u32 [#allocation8], 4
      %s1017 = int_to_ptr.vmem [resolvable:$true] %s1016
      %1022 = dma.vmem_to_hbm [thread:$0]  %s1017, 512, %s7, [#allocation4], 128, 128, 8
    $region45: #{tpu_custom_call.1} parent=1 // pred_fallthru
      _
    // Predicated region
    $region46: #{tpu_custom_call.1} parent=1 // pred_check
      _
    $region47: #{tpu_custom_call.1} parent=1 // pred_check_branch
      %1024 = sbr.rel (0) target = $region49
    $region48: #{tpu_custom_call.1} parent=1 // pred_region
      %1025 = dma.done [#allocation4], 512
    $region49: #{tpu_custom_call.1} parent=1 // pred_fallthru
      _
    %1026 = vsyncpa [#allocation3], 1
    %1027 = vsyncpa [#allocation6], 1
    %1028 = vsyncpa [#allocation4], 1

</llo_original>
